<compile_context>
chip_gen: v6e
topology: v6e:2x2x1
jax: 0.10.0
libtpu: 0.0.40
codegen_flags: <defaults>
</compile_context>

<pallas_src>
import functools
import math

import jax
import jax.numpy as jnp
from jax.experimental import pallas as pl
from jax.experimental.pallas import tpu as pltpu


def _round_up(n, m):
    return ((n + m - 1) // m) * m


def _silu(v):
    return v * jax.nn.sigmoid(v)


# ----------------------------------------------------------------------------
# Kernel 1: DenseFiLM MLP for the whole batch at once (one tiny launch).
#   temb (B, E) -> scale (B, Cp), shift (B, Cp)   (scale/shift heads fused)
# ----------------------------------------------------------------------------
def _film_kernel(temb_ref, fw1_ref, fb1_ref, fw2_ref, fb2_ref,
                 fwss_ref, fbss_ref, scale_ref, shift_ref, *, c_pad):
    h = jnp.dot(temb_ref[...], fw1_ref[...],
                preferred_element_type=jnp.float32) + fb1_ref[...]
    h = _silu(h)
    h = jnp.dot(h, fw2_ref[...],
                preferred_element_type=jnp.float32) + fb2_ref[...]
    ss = jnp.dot(h, fwss_ref[...],
                 preferred_element_type=jnp.float32) + fbss_ref[...]   # (B, 2Cp)
    scale_ref[...] = ss[:, :c_pad]
    shift_ref[...] = ss[:, c_pad:]


# ----------------------------------------------------------------------------
# Kernel 2: DenseResBlock row tile.  Grid = (B, T_tiles), both parallel.
# ----------------------------------------------------------------------------
def _res_block_kernel(
    scale_ref, shift_ref,             # (1, Cp) f32, per-batch blocks
    x_ref,                            # (rows, Cp) stream_dtype tile
    w1_ref, b1_ref,                   # (Cp, Cp) bf16, (1, Cp) f32   (resident)
    w2_ref, b2_ref,                   # (Cp, Cp) bf16, (1, Cp) f32   (resident)
    g1_ref, be1_ref,                  # (1, Cp) f32                  (resident)
    g2_ref, be2_ref,                  # (1, Cp) f32                  (resident)
    o_ref,                            # (rows, Cp) stream_dtype tile
    *, c_true, c_pad,
):
    inv_c = 1.0 / float(c_true)
    if c_true == c_pad:
        mask = None
    else:
        lane = jax.lax.broadcasted_iota(jnp.int32, (1, c_pad), 1)
        mask = (lane < c_true).astype(jnp.float32)

    # LayerNorm over the true C channels only (padded lanes are exactly 0).
    def layer_norm(v, gamma, beta):
        mean = jnp.sum(v, axis=-1, keepdims=True) * inv_c     # pad lanes are 0
        cen = v - mean
        if mask is not None:
            cen = cen * mask                                   # zero pad lanes
        var = jnp.sum(cen * cen, axis=-1, keepdims=True) * inv_c
        return cen * jax.lax.rsqrt(var + 1e-5) * gamma + beta

    # (1, Cp) operands broadcast implicitly over the row tile at the use site.
    scale = scale_ref[...]
    shift = shift_ref[...]

    h = layer_norm(x_ref[...].astype(jnp.float32), g1_ref[...], be1_ref[...])
    h = _silu(scale * h + shift)
    h = jnp.dot(h.astype(jnp.bfloat16), w1_ref[...],
                preferred_element_type=jnp.float32) + b1_ref[...]
    h = layer_norm(h, g2_ref[...], be2_ref[...])
    h = _silu(scale * h + shift)
    h = jnp.dot(h.astype(jnp.bfloat16), w2_ref[...],
                preferred_element_type=jnp.float32) + b2_ref[...]
    # Residual: re-read x_ref here (served from the resident VMEM tile) to
    # avoid pinning a (rows, Cp) live range across the whole body.
    o_ref[...] = (h + x_ref[...].astype(jnp.float32)).astype(o_ref.dtype)


# ----------------------------------------------------------------------------
# Positional timestep embedding (tiny one-off setup; plain JAX).
# ----------------------------------------------------------------------------
def positional_timestep_embedding(t, channels):
    noise = jnp.squeeze(t, axis=-1)                           # (B,)
    half_dim = channels // 2
    emb = math.log(10000) / float(half_dim - 1)
    emb = jnp.exp(jnp.arange(half_dim, dtype=jnp.float32) * -emb)
    emb = 5000.0 * noise[:, None] * emb[None, :]
    emb = jnp.concatenate([jnp.sin(emb), jnp.cos(emb)], axis=1)
    return emb                                                # (B, channels)


# ----------------------------------------------------------------------------
# Wrapper.
# ----------------------------------------------------------------------------
def mlp_layer_forward(x, t, film_params, res_params, embed_channels,
                      row_tile=256, stream_dtype=jnp.float32):
    """MlpLayer forward: y = DenseResBlock(x, *DenseFiLM(t))."""
    B, T, C = x.shape
    E = embed_channels
    E4 = 4 * E
    f32 = jnp.float32

    # Lane-dense channel dim (multiple of 128).
    Cp = _round_up(max(C, 128), 128)

    # Row tile: multiple of 8 sublanes; prefer a tile that divides T so we can
    # skip the whole-tensor pad / final slice (extra HBM passes).
    tile_cap = min(_round_up(row_tile, 8), _round_up(T, 8))
    tile_rows = tile_cap
    if T % 8 == 0:
        cand = tile_cap
        while cand > 8 and T % cand != 0:
            cand -= 8
        if T % cand == 0:
            tile_rows = cand
    Tp = _round_up(T, tile_rows)
    n_t = Tp // tile_rows

    t_emb = positional_timestep_embedding(t, E).astype(f32)            # (B, E)

    # --- repack / zero-pad parameters (zero pads keep padded lanes exactly 0).
    def pad_cols(w, n):
        return jnp.pad(w.astype(f32), ((0, 0), (0, n - w.shape[1])))

    def pad_row(v, n):
        return jnp.pad(v.astype(f32), (0, n - v.shape[0]))[None, :]

    def pad_sq(w, n):
        return jnp.pad(w.astype(f32), ((0, n - w.shape[0]), (0, n - w.shape[1])))

    fp, rp = film_params, res_params
    fw1 = fp["w1"].astype(f32)
    fb1 = fp["b1"].astype(f32)[None, :]
    fw2 = fp["w2"].astype(f32)
    fb2 = fp["b2"].astype(f32)[None, :]
    # Fuse the scale / shift heads into a single (4E, 2*Cp) matmul.
    fwss = jnp.concatenate([pad_cols(fp["ws"], Cp), pad_cols(fp["wsh"], Cp)], axis=1)
    fbss = jnp.concatenate([pad_row(fp["bs"], Cp), pad_row(fp["bsh"], Cp)], axis=1)

    # Res-block matmul weights in bf16 (MXU-native), f32 accumulation in-kernel.
    rw1 = pad_sq(rp["w1"], Cp).astype(jnp.bfloat16)
    rw2 = pad_sq(rp["w2"], Cp).astype(jnp.bfloat16)
    rb1 = pad_row(rp["b1"], Cp)
    rb2 = pad_row(rp["b2"], Cp)
    g1 = pad_row(rp["g1"], Cp)
    be1 = pad_row(rp["be1"], Cp)
    g2 = pad_row(rp["g2"], Cp)
    be2 = pad_row(rp["be2"], Cp)

    # --- DenseFiLM for the whole batch in one tiny pallas_call --------------
    scale, shift = pl.pallas_call(
        functools.partial(_film_kernel, c_pad=Cp),
        out_shape=(jax.ShapeDtypeStruct((B, Cp), f32),
                   jax.ShapeDtypeStruct((B, Cp), f32)),
    )(t_emb, fw1, fb1, fw2, fb2, fwss, fbss)

    # --- Activation tensor: pad ONLY when genuinely misaligned --------------
    needs_pad = (Tp != T) or (Cp != C)
    if needs_pad:
        xp = jnp.pad(x, ((0, 0), (0, Tp - T), (0, Cp - C))).astype(stream_dtype)
    else:
        xp = x.astype(stream_dtype)        # no-op if dtypes already match

    # --- VMEM budget: raise the scoped limit only when large Cp needs it ----
    itemsize = jnp.dtype(stream_dtype).itemsize
    vmem_est = (2 * Cp * Cp * 2                       # resident bf16 weights
                + 2 * 2 * tile_rows * Cp * itemsize   # double-buffered x/out
                + 12 * Cp * 4)                        # per-channel params
    cp_kwargs = dict(dimension_semantics=("parallel", "parallel"))
    if vmem_est > 24 * 1024 * 1024:
        # v6e: physical VMEM is 128 MiB, raise past the 32 MiB scoped default.
        # v7x (64 MiB): once Cp >~ 2048, tile K/N over w1/w2 instead of keeping
        # both (Cp, Cp) bf16 weights fully resident.
        cp_kwargs["vmem_limit_bytes"] = min(100 * 1024 * 1024,
                                            int(vmem_est * 1.5))
    compiler_params = pltpu.CompilerParams(**cp_kwargs)

    kernel = functools.partial(_res_block_kernel, c_true=C, c_pad=Cp)

    def resident(shape):   # grid-invariant operand: stays in VMEM across steps
        return pl.BlockSpec(shape, lambda b, s: (0,) * len(shape))

    out = pl.pallas_call(
        kernel,
        out_shape=jax.ShapeDtypeStruct((B, Tp, Cp), stream_dtype),
        grid=(B, n_t),
        in_specs=[
            pl.BlockSpec((1, Cp), lambda b, s: (b, 0)),                  # scale
            pl.BlockSpec((1, Cp), lambda b, s: (b, 0)),                  # shift
            pl.BlockSpec((None, tile_rows, Cp), lambda b, s: (b, s, 0)), # x
            resident((Cp, Cp)), resident((1, Cp)),            # res linear_1
            resident((Cp, Cp)), resident((1, Cp)),            # res linear_2
            resident((1, Cp)), resident((1, Cp)),             # norm_1 gamma/beta
            resident((1, Cp)), resident((1, Cp)),             # norm_2 gamma/beta
        ],
        out_specs=pl.BlockSpec((None, tile_rows, Cp), lambda b, s: (b, s, 0)),
        compiler_params=compiler_params,
    )(scale, shift, xp, rw1, rb1, rw2, rb2, g1, be1, g2, be2)

    if needs_pad:
        out = out[:, :T, :C]
    return out


# ----------------------------------------------------------------------------
# Pure-JAX (f32) reference mirroring the PyTorch module.
# ----------------------------------------------------------------------------
def _layernorm_ref(v, gamma, beta, eps=1e-5):
    mean = jnp.mean(v, axis=-1, keepdims=True)
    var = jnp.mean((v - mean) ** 2, axis=-1, keepdims=True)
    return (v - mean) * jax.lax.rsqrt(var + eps) * gamma + beta


def mlp_layer_reference(x, t, fp, rp, embed_channels):
    t_emb = positional_timestep_embedding(t, embed_channels)
    h = _silu(t_emb @ fp["w1"] + fp["b1"])
    h = h @ fp["w2"] + fp["b2"]
    scale = (h @ fp["ws"] + fp["bs"])[:, None, :]
    shift = (h @ fp["wsh"] + fp["bsh"])[:, None, :]
    shortcut = x
    y = _layernorm_ref(x, rp["g1"], rp["be1"])
    y = _silu(scale * y + shift)
    y = y @ rp["w1"] + rp["b1"]
    y = _layernorm_ref(y, rp["g2"], rp["be2"])
    y = _silu(scale * y + shift)
    y = y @ rp["w2"] + rp["b2"]
    return y + shortcut


if __name__ == "__main__":
    B, T = 2, 8
    embed_channels = 16          # timestep_embed_channels
    mlp_dims = 32                # C

    key = jax.random.PRNGKey(0)
    ks = jax.random.split(key, 20)

    E, C = embed_channels, mlp_dims
    s = 0.05
    film_params = {
        "w1": s * jax.random.normal(ks[0], (E, 4 * E), jnp.float32),
        "b1": s * jax.random.normal(ks[1], (4 * E,), jnp.float32),
        "w2": s * jax.random.normal(ks[2], (4 * E, 4 * E), jnp.float32),
        "b2": s * jax.random.normal(ks[3], (4 * E,), jnp.float32),
        "ws": s * jax.random.normal(ks[4], (4 * E, C), jnp.float32),
        "bs": s * jax.random.normal(ks[5], (C,), jnp.float32),
        "wsh": s * jax.random.normal(ks[6], (4 * E, C), jnp.float32),
        "bsh": s * jax.random.normal(ks[7], (C,), jnp.float32),
    }
    res_params = {
        "w1": s * jax.random.normal(ks[8], (C, C), jnp.float32),
        "b1": s * jax.random.normal(ks[9], (C,), jnp.float32),
        "w2": s * jax.random.normal(ks[10], (C, C), jnp.float32),
        "b2": s * jax.random.normal(ks[11], (C,), jnp.float32),
        "g1": 1.0 + 0.1 * jax.random.normal(ks[12], (C,), jnp.float32),
        "be1": 0.1 * jax.random.normal(ks[13], (C,), jnp.float32),
        "g2": 1.0 + 0.1 * jax.random.normal(ks[14], (C,), jnp.float32),
        "be2": 0.1 * jax.random.normal(ks[15], (C,), jnp.float32),
    }

    x = jax.random.normal(ks[16], (B, T, C), jnp.float32)
    t = jax.random.uniform(ks[17], (B, 1), jnp.float32)

    out = mlp_layer_forward(x, t, film_params, res_params, embed_channels)
    out = jax.block_until_ready(out)
    ref = mlp_layer_reference(x, t, film_params, res_params, embed_channels)
    assert out.shape == (B, T, C)
    # bf16 matmul operands (f32 accumulation) -> slightly looser tolerance.
    assert jnp.allclose(out, ref, atol=1e-2, rtol=1e-2), "mismatch vs reference"

    # Second check: multi-tile sequence axis + ragged-T padding path.
    T2 = 20
    x2 = jax.random.normal(ks[18], (B, T2, C), jnp.float32)
    out2 = mlp_layer_forward(x2, t, film_params, res_params, embed_channels,
                             row_tile=8)
    out2 = jax.block_until_ready(out2)
    ref2 = mlp_layer_reference(x2, t, film_params, res_params, embed_channels)
    assert out2.shape == (B, T2, C)
    assert jnp.allclose(out2, ref2, atol=1e-2, rtol=1e-2), "mismatch (tiled T)"

    print("KERNEL_OK")
</pallas_src>

<mosaic_0001>
module attributes {stable_mosaic.version = 11 : i64} {
  func.func @_film_kernel(%arg0: memref<2x16xf32, #tpu.memory_space<vmem>>, %arg1: memref<16x64xf32, #tpu.memory_space<vmem>>, %arg2: memref<1x64xf32, #tpu.memory_space<vmem>>, %arg3: memref<64x64xf32, #tpu.memory_space<vmem>>, %arg4: memref<1x64xf32, #tpu.memory_space<vmem>>, %arg5: memref<64x256xf32, #tpu.memory_space<vmem>>, %arg6: memref<1x256xf32, #tpu.memory_space<vmem>>, %arg7: memref<2x128xf32, #tpu.memory_space<vmem>>, %arg8: memref<2x128xf32, #tpu.memory_space<vmem>>) attributes {dimension_semantics = [], scalar_prefetch = 0 : i64, scratch_operands = 0 : i64, tpu.core_type = #tpu.core_type<tc>} {
    %c0 = arith.constant 0 : index
    %c0_0 = arith.constant 0 : index
    %0 = vector.load %arg0[%c0, %c0_0] : memref<2x16xf32, #tpu.memory_space<vmem>>, vector<2x16xf32>
    %c0_1 = arith.constant 0 : index
    %c0_2 = arith.constant 0 : index
    %1 = vector.load %arg1[%c0_1, %c0_2] : memref<16x64xf32, #tpu.memory_space<vmem>>, vector<16x64xf32>
    %cst = arith.constant dense<0.000000e+00> : vector<2x64xf32>
    %2 = tpu.matmul %0, %1, %cst {dimension_numbers = #tpu.dot_dimension_numbers<[1], [0], [0], [1], [0, 0, 1, 1], [], []>} : vector<2x16xf32>, vector<16x64xf32>, vector<2x64xf32> -> vector<2x64xf32>
    %c0_3 = arith.constant 0 : index
    %c0_4 = arith.constant 0 : index
    %3 = vector.load %arg2[%c0_3, %c0_4] : memref<1x64xf32, #tpu.memory_space<vmem>>, vector<1x64xf32>
    %4 = vector.broadcast %3 : vector<1x64xf32> to vector<2x64xf32>
    %5 = arith.addf %2, %4 : vector<2x64xf32>
    %6 = arith.negf %5 : vector<2x64xf32>
    %7 = math.exp %6 : vector<2x64xf32>
    %cst_5 = arith.constant 1.000000e+00 : f32
    %8 = vector.broadcast %cst_5 : f32 to vector<2x64xf32>
    %9 = arith.addf %8, %7 : vector<2x64xf32>
    %10 = arith.divf %8, %9 : vector<2x64xf32>
    %11 = arith.mulf %5, %10 : vector<2x64xf32>
    %c0_6 = arith.constant 0 : index
    %c0_7 = arith.constant 0 : index
    %12 = vector.load %arg3[%c0_6, %c0_7] : memref<64x64xf32, #tpu.memory_space<vmem>>, vector<64x64xf32>
    %cst_8 = arith.constant dense<0.000000e+00> : vector<2x64xf32>
    %13 = tpu.matmul %11, %12, %cst_8 {dimension_numbers = #tpu.dot_dimension_numbers<[1], [0], [0], [1], [0, 0, 1, 1], [], []>} : vector<2x64xf32>, vector<64x64xf32>, vector<2x64xf32> -> vector<2x64xf32>
    %c0_9 = arith.constant 0 : index
    %c0_10 = arith.constant 0 : index
    %14 = vector.load %arg4[%c0_9, %c0_10] : memref<1x64xf32, #tpu.memory_space<vmem>>, vector<1x64xf32>
    %15 = vector.broadcast %14 : vector<1x64xf32> to vector<2x64xf32>
    %16 = arith.addf %13, %15 : vector<2x64xf32>
    %c0_11 = arith.constant 0 : index
    %c0_12 = arith.constant 0 : index
    %17 = vector.load %arg5[%c0_11, %c0_12] : memref<64x256xf32, #tpu.memory_space<vmem>>, vector<64x256xf32>
    %cst_13 = arith.constant dense<0.000000e+00> : vector<2x256xf32>
    %18 = tpu.matmul %16, %17, %cst_13 {dimension_numbers = #tpu.dot_dimension_numbers<[1], [0], [0], [1], [0, 0, 1, 1], [], []>} : vector<2x64xf32>, vector<64x256xf32>, vector<2x256xf32> -> vector<2x256xf32>
    %c0_14 = arith.constant 0 : index
    %c0_15 = arith.constant 0 : index
    %19 = vector.load %arg6[%c0_14, %c0_15] : memref<1x256xf32, #tpu.memory_space<vmem>>, vector<1x256xf32>
    %20 = vector.broadcast %19 : vector<1x256xf32> to vector<2x256xf32>
    %21 = arith.addf %18, %20 : vector<2x256xf32>
    %22 = vector.extract_strided_slice %21 {offsets = [0, 0], sizes = [2, 128], strides = [1, 1]} : vector<2x256xf32> to vector<2x128xf32>
    %c0_16 = arith.constant 0 : index
    %c0_17 = arith.constant 0 : index
    %23 = vector.load %arg7[%c0_16, %c0_17] : memref<2x128xf32, #tpu.memory_space<vmem>>, vector<2x128xf32>
    tpu.vector_store %arg7[%c0_16, %c0_17], %22 {strides = array<i32>} : memref<2x128xf32, #tpu.memory_space<vmem>>, vector<2x128xf32>,
    %24 = vector.extract_strided_slice %21 {offsets = [0, 128], sizes = [2, 128], strides = [1, 1]} : vector<2x256xf32> to vector<2x128xf32>
    %c0_18 = arith.constant 0 : index
    %c0_19 = arith.constant 0 : index
    %25 = vector.load %arg8[%c0_18, %c0_19] : memref<2x128xf32, #tpu.memory_space<vmem>>, vector<2x128xf32>
    tpu.vector_store %arg8[%c0_18, %c0_19], %24 {strides = array<i32>} : memref<2x128xf32, #tpu.memory_space<vmem>>, vector<2x128xf32>,
    return
  }
}

</mosaic_0001>

<llo_original>
// kernel: tpu_custom_call.1
$region0: #{tpu_custom_call.1}
  #allocation0 [shape = 'u32[]', space=smem, size = 0x4, offset = 0x4, fixed_abs, tag = 'smem constant byte address 0x4 - core index']
  #allocation1 [shape = 'u32[144,128]{1,0:T(1,128)}', space=vmem, size = 0x12000, scoped, tag = 'internal scratch']
  %s0 = inlined_call_operand.hbm [shape: f32[2,16], index: 0, kind: input, shape index: {}]
  %s1 = inlined_call_operand.hbm [shape: f32[16,64], index: 1, kind: input, shape index: {}]
  %s2 = inlined_call_operand.vmem [shape: f32[1,64], index: 2, kind: input, shape index: {}]
  %s3 = inlined_call_operand.hbm [shape: f32[64,64], index: 3, kind: input, shape index: {}]
  %s4 = inlined_call_operand.vmem [shape: f32[1,64], index: 4, kind: input, shape index: {}]
  %s5 = inlined_call_operand.hbm [shape: f32[64,256], index: 5, kind: input, shape index: {}]
  %s6 = inlined_call_operand.vmem [shape: f32[1,256], index: 6, kind: input, shape index: {}]
  %s7 = inlined_call_operand.hbm [shape: f32[2,128], index: 7, kind: output, shape index: {0}]
  %s8 = inlined_call_operand.hbm [shape: f32[2,128], index: 8, kind: output, shape index: {1}]
  %9 = xla_tuple %s7, %s8
  %s10 = sld [smem:[#allocation0]]
  $region62: #{tpu_custom_call.1} parent=0
    _
  %s12 = ssub.s32 1, %s10
  %s13 = scalar_select 0, %s12, %s10
  $region1: #{tpu_custom_call.1} parent=0
    #allocation2 [shape = 'u8[1024]{0}', space=vmem, size = 0x400, scoped, tag = 'input window, operand 0, single buffered']
    #allocation3 [shape = 's32[1]{0}', space=sflag, size = 0x4, scoped, tag = 'scoped memory for tpu_custom_call.1']
    #allocation4 [shape = 's32[1]{0}', space=sflag, size = 0x4, scoped, tag = 'scoped memory for tpu_custom_call.1']
    #allocation5 [shape = 'u8[8192]{0}', space=vmem, size = 0x2000, scoped, tag = 'input window, operand 1, single buffered']
    #allocation6 [shape = 's32[1]{0}', space=sflag, size = 0x4, scoped, tag = 'scoped memory for tpu_custom_call.1']
    #allocation7 [shape = 'u8[32768]{0}', space=vmem, size = 0x8000, scoped, tag = 'input window, operand 3, single buffered']
    #allocation8 [shape = 'u8[65536]{0}', space=vmem, size = 0x10000, scoped, tag = 'input window, operand 5, single buffered']
    #allocation9 [shape = 's32[1]{0}', space=sflag, size = 0x4, scoped, tag = 'scoped memory for tpu_custom_call.1']
    #allocation10 [shape = 'u8[1024]{0}', space=vmem, size = 0x400, scoped, tag = 'output window, operand 0, single buffered']
    #allocation11 [shape = 'u8[1024]{0}', space=vmem, size = 0x400, scoped, tag = 'output window, operand 1, single buffered']
    #allocation12 [shape = 's32[1]{0}', space=sflag, size = 0x4, scoped, tag = 'scoped memory for tpu_custom_call.1']
    %14 = vsyncpa [#allocation3], 0
    %15 = vsyncpa [#allocation6], 0
    %16 = vsyncpa [#allocation9], 0
    %17 = vsyncpa [#allocation4], 0
    %18 = vsyncpa [#allocation12], 0
    // Predicated region
    $region2: #{tpu_custom_call.1} parent=1 // pred_check
      _
    $region3: #{tpu_custom_call.1} parent=1 // pred_check_branch
      %20 = sbr.rel (0) target = $region5
    $region4: #{tpu_custom_call.1} parent=1 // pred_region
      %s22 = ssub.s32 32, 32
      %23 = vsyncadd [#allocation3], %s22
      %s25 = sshll.u32 [#allocation2], 4
      %s26 = int_to_ptr.vmem [resolvable:$true] %s25
      %28 = dma.hbm_to_vmem [thread:$0]  %s0, 32, %s26, [#allocation3]
    $region5: #{tpu_custom_call.1} parent=1 // pred_fallthru
      _
    // Predicated region
    $region6: #{tpu_custom_call.1} parent=1 // pred_check
      _
    $region7: #{tpu_custom_call.1} parent=1 // pred_check_branch
      %30 = sbr.rel (0) target = $region9
    $region8: #{tpu_custom_call.1} parent=1 // pred_region
      %s32 = ssub.s32 256, 256
      %33 = vsyncadd [#allocation6], %s32
      %s34 = sshll.u32 [#allocation5], 4
      %s35 = int_to_ptr.vmem [resolvable:$true] %s34
      %40 = dma.hbm_to_vmem [thread:$0]  %s1, 256, %s35, [#allocation6], 128, 128, 8
    $region9: #{tpu_custom_call.1} parent=1 // pred_fallthru
      _
    // Predicated region
    $region10: #{tpu_custom_call.1} parent=1 // pred_check
      _
    $region11: #{tpu_custom_call.1} parent=1 // pred_check_branch
      %42 = sbr.rel (0) target = $region13
    $region12: #{tpu_custom_call.1} parent=1 // pred_region
      _
    $region13: #{tpu_custom_call.1} parent=1 // pred_fallthru
      _
    // Predicated region
    $region14: #{tpu_custom_call.1} parent=1 // pred_check
      _
    $region15: #{tpu_custom_call.1} parent=1 // pred_check_branch
      %44 = sbr.rel (0) target = $region17
    $region16: #{tpu_custom_call.1} parent=1 // pred_region
      %s46 = ssub.s32 1024, 1024
      %47 = vsyncadd [#allocation6], %s46
      %s48 = sshll.u32 [#allocation7], 4
      %s49 = int_to_ptr.vmem [resolvable:$true] %s48
      %54 = dma.hbm_to_vmem [thread:$0]  %s3, 1024, %s49, [#allocation6], 128, 128, 8
    $region17: #{tpu_custom_call.1} parent=1 // pred_fallthru
      _
    // Predicated region
    $region18: #{tpu_custom_call.1} parent=1 // pred_check
      _
    $region19: #{tpu_custom_call.1} parent=1 // pred_check_branch
      %56 = sbr.rel (0) target = $region21
    $region20: #{tpu_custom_call.1} parent=1 // pred_region
      _
    $region21: #{tpu_custom_call.1} parent=1 // pred_fallthru
      _
    // Predicated region
    $region22: #{tpu_custom_call.1} parent=1 // pred_check
      _
    $region23: #{tpu_custom_call.1} parent=1 // pred_check_branch
      %58 = sbr.rel (0) target = $region25
    $region24: #{tpu_custom_call.1} parent=1 // pred_region
      %s60 = ssub.s32 2048, 2048
      %61 = vsyncadd [#allocation9], %s60
      %s62 = sshll.u32 [#allocation8], 4
      %s63 = int_to_ptr.vmem [resolvable:$true] %s62
      %68 = dma.hbm_to_vmem [thread:$0]  %s5, 2048, %s63, [#allocation9], 256, 256, 16
    $region25: #{tpu_custom_call.1} parent=1 // pred_fallthru
      _
    // Predicated region
    $region26: #{tpu_custom_call.1} parent=1 // pred_check
      _
    $region27: #{tpu_custom_call.1} parent=1 // pred_check_branch
      %70 = sbr.rel (0) target = $region29
    $region28: #{tpu_custom_call.1} parent=1 // pred_region
      _
    $region29: #{tpu_custom_call.1} parent=1 // pred_fallthru
      _
    // Predicated region
    $region30: #{tpu_custom_call.1} parent=1 // pred_check
      _
    $region31: #{tpu_custom_call.1} parent=1 // pred_check_branch
      %72 = sbr.rel (0) target = $region33
    $region32: #{tpu_custom_call.1} parent=1 // pred_region
      %73 = dma.done [#allocation3], 32
    $region33: #{tpu_custom_call.1} parent=1 // pred_fallthru
      _
    // Predicated region
    $region34: #{tpu_custom_call.1} parent=1 // pred_check
      _
    $region35: #{tpu_custom_call.1} parent=1 // pred_check_branch
      %75 = sbr.rel (0) target = $region37
    $region36: #{tpu_custom_call.1} parent=1 // pred_region
      %76 = dma.done [#allocation6], 256
    $region37: #{tpu_custom_call.1} parent=1 // pred_fallthru
      _
    // Predicated region
    $region38: #{tpu_custom_call.1} parent=1 // pred_check
      _
    $region39: #{tpu_custom_call.1} parent=1 // pred_check_branch
      %78 = sbr.rel (0) target = $region41
    $region40: #{tpu_custom_call.1} parent=1 // pred_region
      %79 = dma.done [#allocation6], 1024
    $region41: #{tpu_custom_call.1} parent=1 // pred_fallthru
      _
    // Predicated region
    $region42: #{tpu_custom_call.1} parent=1 // pred_check
      _
    $region43: #{tpu_custom_call.1} parent=1 // pred_check_branch
      %81 = sbr.rel (0) target = $region45
    $region44: #{tpu_custom_call.1} parent=1 // pred_region
      %82 = dma.done [#allocation9], 2048
    $region45: #{tpu_custom_call.1} parent=1 // pred_fallthru
      _
    %v83 = vld [vmem:[#allocation2] sm:$0x3]
    %v84 = vld [vmem:[#allocation5] sm:$0xff]
    %v85 = vld [vmem:[#allocation5 + $0x8] sm:$0xff]
    %v86 = vld [vmem:[%s2] sm:$0x1]
    %v88 = vlaneseq
    %v89 = vshrl.u32 %v88, 7
    %v90 = vsub.s32 0, %v89
    %v91 = vrot.slane %v86, %v90
    %vm93 = vcmask 130048
    %v95 = vsel %vm93, %v83, 0
    %97 = vmatprep.subr.mxu0 0.0
    %98 = vmatpush1.msra.mxu0 0.0
    %99 = vmatprep.subr.mxu0 0.0
    %100 = vmatpush1.msra.mxu0 0.0
    %101 = vmatprep.subr.mxu0 0.0
    %102 = vmatpush1.msra.mxu0 0.0
    %103 = vmatprep.subr.mxu0 0.0
    %104 = vmatpush1.msra.mxu0 0.0
    %105 = vmatprep.subr.mxu0 0.0
    %106 = vmatpush1.msra.mxu0 0.0
    %107 = vmatprep.subr.mxu0 0.0
    %108 = vmatpush1.msra.mxu0 0.0
    %109 = vmatprep.subr.mxu0 0.0
    %110 = vmatpush1.msra.mxu0 0.0
    %111 = vmatprep.subr.mxu0 0.0
    %112 = vmatpush1.msra.mxu0 0.0
    %113 = vmatprep.subr.mxu0 0.0
    %114 = vmatpush1.msra.mxu0 0.0
    %115 = vmatprep.subr.mxu0 0.0
    %116 = vmatpush1.msra.mxu0 0.0
    %117 = vmatprep.subr.mxu0 0.0
    %118 = vmatpush1.msra.mxu0 0.0
    %119 = vmatprep.subr.mxu0 0.0
    %120 = vmatpush1.msra.mxu0 0.0
    %121 = vmatprep.subr.mxu0 0.0
    %122 = vmatpush1.msra.mxu0 0.0
    %123 = vmatprep.subr.mxu0 0.0
    %124 = vmatpush1.msra.mxu0 0.0
    %125 = vmatprep.subr.mxu0 0.0
    %126 = vmatpush1.msra.mxu0 %v85
    %127 = vmatprep.subr.mxu0 0.0
    %128 = vmatpush1.msra.mxu0 %v84
    %129 = vmatprep.subr.mxu0 0.0
    %130 = vmatpush2.msra.mxu0 0.0
    %131 = vmatprep.subr.mxu0 0.0
    %132 = vmatpush2.msra.mxu0 0.0
    %133 = vmatprep.subr.mxu0 0.0
    %134 = vmatpush2.msra.mxu0 0.0
    %135 = vmatprep.subr.mxu0 0.0
    %136 = vmatpush2.msra.mxu0 0.0
    %137 = vmatprep.subr.mxu0 0.0
    %138 = vmatpush2.msra.mxu0 0.0
    %139 = vmatprep.subr.mxu0 0.0
    %140 = vmatpush2.msra.mxu0 0.0
    %141 = vmatprep.subr.mxu0 0.0
    %142 = vmatpush2.msra.mxu0 0.0
    %143 = vmatprep.subr.mxu0 0.0
    %144 = vmatpush2.msra.mxu0 0.0
    %145 = vmatprep.subr.mxu0 0.0
    %146 = vmatpush2.msra.mxu0 0.0
    %147 = vmatprep.subr.mxu0 0.0
    %148 = vmatpush2.msra.mxu0 0.0
    %149 = vmatprep.subr.mxu0 0.0
    %150 = vmatpush2.msra.mxu0 0.0
    %151 = vmatprep.subr.mxu0 0.0
    %152 = vmatpush2.msra.mxu0 0.0
    %153 = vmatprep.subr.mxu0 0.0
    %154 = vmatpush2.msra.mxu0 0.0
    %155 = vmatprep.subr.mxu0 0.0
    %156 = vmatpush2.msra.mxu0 0.0
    %157 = vmatprep.subr.mxu0 0.0
    %158 = vmatpush2.msra.mxu0 0.0
    %159 = vmatprep.subr.mxu0 0.0
    %160 = vmatpush2.msra.mxu0 0.0
    %161 = vmatprep.mubr.f32.mxu0 0.0
    %162 = vmatmul.mubr.f32.gmra.mxu0 %v95
    %v163 = vpop.f32.mrf.mxu0
    %v164 = vadd.f32 %v91, %v163
    %v165 = vpop.f32.mrf.mxu0
    %166 = vdwg.mxu0
    %v167 = vxor.u32 %v164, 2147483648
    %v168 = vmul.f32 %v167, 1.442695
    %v169 = vpow.pop %v168
    %v170 = vadd.f32 %v169, 1.0
    %v171 = vrcp.pop %v170
    %v172 = vmul.f32 1.0, %v171
    %v173 = vmul.f32 %v164, %v172
    %v174 = vld [vmem:[#allocation7] sm:$0xff]
    %v175 = vld [vmem:[#allocation7 + $0x8] sm:$0xff]
    %v176 = vld [vmem:[#allocation7 + $0x10] sm:$0xff]
    %v177 = vld [vmem:[#allocation7 + $0x18] sm:$0xff]
    %v178 = vld [vmem:[#allocation7 + $0x20] sm:$0xff]
    %v179 = vld [vmem:[#allocation7 + $0x28] sm:$0xff]
    %v180 = vld [vmem:[#allocation7 + $0x30] sm:$0xff]
    %v181 = vld [vmem:[#allocation7 + $0x38] sm:$0xff]
    %v182 = vld [vmem:[%s4] sm:$0x1]
    %v184 = vlaneseq
    %v185 = vshrl.u32 %v184, 7
    %v186 = vsub.s32 0, %v185
    %v187 = vrot.slane %v182, %v186
    %vm189 = vcmask 523264
    %v191 = vsel %vm189, %v173, 0
    %193 = vmatprep.subr.mxu0 0.0
    %194 = vmatpush1.msra.mxu0 0.0
    %195 = vmatprep.subr.mxu0 0.0
    %196 = vmatpush1.msra.mxu0 0.0
    %197 = vmatprep.subr.mxu0 0.0
    %198 = vmatpush1.msra.mxu0 0.0
    %199 = vmatprep.subr.mxu0 0.0
    %200 = vmatpush1.msra.mxu0 0.0
    %201 = vmatprep.subr.mxu0 0.0
    %202 = vmatpush1.msra.mxu0 0.0
    %203 = vmatprep.subr.mxu0 0.0
    %204 = vmatpush1.msra.mxu0 0.0
    %205 = vmatprep.subr.mxu0 0.0
    %206 = vmatpush1.msra.mxu0 0.0
    %207 = vmatprep.subr.mxu0 0.0
    %208 = vmatpush1.msra.mxu0 0.0
    %209 = vmatprep.subr.mxu0 0.0
    %210 = vmatpush1.msra.mxu0 %v181
    %211 = vmatprep.subr.mxu0 0.0
    %212 = vmatpush1.msra.mxu0 %v180
    %213 = vmatprep.subr.mxu0 0.0
    %214 = vmatpush1.msra.mxu0 %v179
    %215 = vmatprep.subr.mxu0 0.0
    %216 = vmatpush1.msra.mxu0 %v178
    %217 = vmatprep.subr.mxu0 0.0
    %218 = vmatpush1.msra.mxu0 %v177
    %219 = vmatprep.subr.mxu0 0.0
    %220 = vmatpush1.msra.mxu0 %v176
    %221 = vmatprep.subr.mxu0 0.0
    %222 = vmatpush1.msra.mxu0 %v175
    %223 = vmatprep.subr.mxu0 0.0
    %224 = vmatpush1.msra.mxu0 %v174
    %225 = vmatprep.subr.mxu0 0.0
    %226 = vmatpush2.msra.mxu0 0.0
    %227 = vmatprep.subr.mxu0 0.0
    %228 = vmatpush2.msra.mxu0 0.0
    %229 = vmatprep.subr.mxu0 0.0
    %230 = vmatpush2.msra.mxu0 0.0
    %231 = vmatprep.subr.mxu0 0.0
    %232 = vmatpush2.msra.mxu0 0.0
    %233 = vmatprep.subr.mxu0 0.0
    %234 = vmatpush2.msra.mxu0 0.0
    %235 = vmatprep.subr.mxu0 0.0
    %236 = vmatpush2.msra.mxu0 0.0
    %237 = vmatprep.subr.mxu0 0.0
    %238 = vmatpush2.msra.mxu0 0.0
    %239 = vmatprep.subr.mxu0 0.0
    %240 = vmatpush2.msra.mxu0 0.0
    %241 = vmatprep.subr.mxu0 0.0
    %242 = vmatpush2.msra.mxu0 0.0
    %243 = vmatprep.subr.mxu0 0.0
    %244 = vmatpush2.msra.mxu0 0.0
    %245 = vmatprep.subr.mxu0 0.0
    %246 = vmatpush2.msra.mxu0 0.0
    %247 = vmatprep.subr.mxu0 0.0
    %248 = vmatpush2.msra.mxu0 0.0
    %249 = vmatprep.subr.mxu0 0.0
    %250 = vmatpush2.msra.mxu0 0.0
    %251 = vmatprep.subr.mxu0 0.0
    %252 = vmatpush2.msra.mxu0 0.0
    %253 = vmatprep.subr.mxu0 0.0
    %254 = vmatpush2.msra.mxu0 0.0
    %255 = vmatprep.subr.mxu0 0.0
    %256 = vmatpush2.msra.mxu0 0.0
    %257 = vmatprep.mubr.f32.mxu0 0.0
    %258 = vmatmul.mubr.f32.gmra.mxu0 %v191
    %v259 = vpop.f32.mrf.mxu0
    %v260 = vadd.f32 %v187, %v259
    %v261 = vpop.f32.mrf.mxu0
    %262 = vdwg.mxu0
    %v263 = vld [vmem:[#allocation8] sm:$0xff]
    %v264 = vld [vmem:[#allocation8 + $0x8] sm:$0xff]
    %v265 = vld [vmem:[#allocation8 + $0x10] sm:$0xff]
    %v266 = vld [vmem:[#allocation8 + $0x18] sm:$0xff]
    %v267 = vld [vmem:[#allocation8 + $0x20] sm:$0xff]
    %v268 = vld [vmem:[#allocation8 + $0x28] sm:$0xff]
    %v269 = vld [vmem:[#allocation8 + $0x30] sm:$0xff]
    %v270 = vld [vmem:[#allocation8 + $0x38] sm:$0xff]
    %v271 = vld [vmem:[#allocation8 + $0x40] sm:$0xff]
    %v272 = vld [vmem:[#allocation8 + $0x48] sm:$0xff]
    %v273 = vld [vmem:[#allocation8 + $0x50] sm:$0xff]
    %v274 = vld [vmem:[#allocation8 + $0x58] sm:$0xff]
    %v275 = vld [vmem:[#allocation8 + $0x60] sm:$0xff]
    %v276 = vld [vmem:[#allocation8 + $0x68] sm:$0xff]
    %v277 = vld [vmem:[#allocation8 + $0x70] sm:$0xff]
    %v278 = vld [vmem:[#allocation8 + $0x78] sm:$0xff]
    %v279 = vld [vmem:[%s6] sm:$0x3]
    %v281 = vlaneseq
    %v282 = vshrl.u32 %v281, 7
    %v283 = vsub.s32 0, %v282
    %v284 = vrot.slane %v279, %v283
    %v285 = vlaneseq
    %v286 = vshrl.u32 %v285, 7
    %v287 = vsub.s32 1, %v286
    %v288 = vrot.slane %v279, %v287
    %v292 = vsel %vm189, %v260, 0
    %294 = vmatprep.subr.mxu0 0.0
    %295 = vmatpush1.msra.mxu0 0.0
    %296 = vmatprep.subr.mxu0 0.0
    %297 = vmatpush1.msra.mxu0 0.0
    %298 = vmatprep.subr.mxu0 0.0
    %299 = vmatpush1.msra.mxu0 0.0
    %300 = vmatprep.subr.mxu0 0.0
    %301 = vmatpush1.msra.mxu0 0.0
    %302 = vmatprep.subr.mxu0 0.0
    %303 = vmatpush1.msra.mxu0 0.0
    %304 = vmatprep.subr.mxu0 0.0
    %305 = vmatpush1.msra.mxu0 0.0
    %306 = vmatprep.subr.mxu0 0.0
    %307 = vmatpush1.msra.mxu0 0.0
    %308 = vmatprep.subr.mxu0 0.0
    %309 = vmatpush1.msra.mxu0 0.0
    %310 = vmatprep.subr.mxu0 %v278
    %311 = vmatpush1.msra.mxu0 %v277
    %312 = vmatprep.subr.mxu0 %v276
    %313 = vmatpush1.msra.mxu0 %v275
    %314 = vmatprep.subr.mxu0 %v274
    %315 = vmatpush1.msra.mxu0 %v273
    %316 = vmatprep.subr.mxu0 %v272
    %317 = vmatpush1.msra.mxu0 %v271
    %318 = vmatprep.subr.mxu0 %v270
    %319 = vmatpush1.msra.mxu0 %v269
    %320 = vmatprep.subr.mxu0 %v268
    %321 = vmatpush1.msra.mxu0 %v267
    %322 = vmatprep.subr.mxu0 %v266
    %323 = vmatpush1.msra.mxu0 %v265
    %324 = vmatprep.subr.mxu0 %v264
    %325 = vmatpush1.msra.mxu0 %v263
    %326 = vmatprep.subr.mxu0 0.0
    %327 = vmatpush2.msra.mxu0 0.0
    %328 = vmatprep.subr.mxu0 0.0
    %329 = vmatpush2.msra.mxu0 0.0
    %330 = vmatprep.subr.mxu0 0.0
    %331 = vmatpush2.msra.mxu0 0.0
    %332 = vmatprep.subr.mxu0 0.0
    %333 = vmatpush2.msra.mxu0 0.0
    %334 = vmatprep.subr.mxu0 0.0
    %335 = vmatpush2.msra.mxu0 0.0
    %336 = vmatprep.subr.mxu0 0.0
    %337 = vmatpush2.msra.mxu0 0.0
    %338 = vmatprep.subr.mxu0 0.0
    %339 = vmatpush2.msra.mxu0 0.0
    %340 = vmatprep.subr.mxu0 0.0
    %341 = vmatpush2.msra.mxu0 0.0
    %342 = vmatprep.subr.mxu0 0.0
    %343 = vmatpush2.msra.mxu0 0.0
    %344 = vmatprep.subr.mxu0 0.0
    %345 = vmatpush2.msra.mxu0 0.0
    %346 = vmatprep.subr.mxu0 0.0
    %347 = vmatpush2.msra.mxu0 0.0
    %348 = vmatprep.subr.mxu0 0.0
    %349 = vmatpush2.msra.mxu0 0.0
    %350 = vmatprep.subr.mxu0 0.0
    %351 = vmatpush2.msra.mxu0 0.0
    %352 = vmatprep.subr.mxu0 0.0
    %353 = vmatpush2.msra.mxu0 0.0
    %354 = vmatprep.subr.mxu0 0.0
    %355 = vmatpush2.msra.mxu0 0.0
    %356 = vmatprep.subr.mxu0 0.0
    %357 = vmatpush2.msra.mxu0 0.0
    %358 = vmatprep.mubr.f32.mxu0 0.0
    %359 = vmatmul.mubr.f32.gmra.mxu0 %v292
    %v360 = vpop.f32.mrf.mxu0
    %v361 = vadd.f32 %v284, %v360
    %v362 = vpop.f32.mrf.mxu0
    %v363 = vadd.f32 %v288, %v362
    %364 = vdwg.mxu0
    %365 = vst [vmem:[#allocation10] sm:$0x3] %v361
    %366 = vst [vmem:[#allocation11] sm:$0x3] %v363
    // Predicated region
    $region46: #{tpu_custom_call.1} parent=1 // pred_check
      _
    $region47: #{tpu_custom_call.1} parent=1 // pred_check_branch
      %368 = sbr.rel (0) target = $region49
    $region48: #{tpu_custom_call.1} parent=1 // pred_region
      %s370 = ssub.s32 32, 32
      %371 = vsyncadd [#allocation4], %s370
      %s373 = sshll.u32 [#allocation10], 4
      %s374 = int_to_ptr.vmem [resolvable:$true] %s373
      %376 = dma.vmem_to_hbm [thread:$0]  %s374, 32, %s7, [#allocation4]
    $region49: #{tpu_custom_call.1} parent=1 // pred_fallthru
      _
    // Predicated region
    $region50: #{tpu_custom_call.1} parent=1 // pred_check
      _
    $region51: #{tpu_custom_call.1} parent=1 // pred_check_branch
      %378 = sbr.rel (0) target = $region53
    $region52: #{tpu_custom_call.1} parent=1 // pred_region
      %s380 = ssub.s32 32, 32
      %381 = vsyncadd [#allocation12], %s380
      %s383 = sshll.u32 [#allocation11], 4
      %s384 = int_to_ptr.vmem [resolvable:$true] %s383
      %386 = dma.vmem_to_hbm [thread:$0]  %s384, 32, %s8, [#allocation12]
    $region53: #{tpu_custom_call.1} parent=1 // pred_fallthru
      _
    // Predicated region
    $region54: #{tpu_custom_call.1} parent=1 // pred_check
      _
    $region55: #{tpu_custom_call.1} parent=1 // pred_check_branch
      %388 = sbr.rel (0) target = $region57
    $region56: #{tpu_custom_call.1} parent=1 // pred_region
      %389 = dma.done [#allocation4], 32
    $region57: #{tpu_custom_call.1} parent=1 // pred_fallthru
      _
    // Predicated region
    $region58: #{tpu_custom_call.1} parent=1 // pred_check
      _
    $region59: #{tpu_custom_call.1} parent=1 // pred_check_branch
      %391 = sbr.rel (0) target = $region61
    $region60: #{tpu_custom_call.1} parent=1 // pred_region
      %392 = dma.done [#allocation12], 32
    $region61: #{tpu_custom_call.1} parent=1 // pred_fallthru
      _
    %393 = vsyncpa [#allocation3], 1
    %394 = vsyncpa [#allocation6], 1
    %395 = vsyncpa [#allocation9], 1
    %396 = vsyncpa [#allocation4], 1
    %397 = vsyncpa [#allocation12], 1

</llo_original>
